<compile_context>
chip_gen: v6e
topology: v6e:2x2x1
jax: 0.10.0
libtpu: 0.0.40
codegen_flags: <defaults>
</compile_context>

<pallas_src>
import functools

import jax
import jax.numpy as jnp
from jax.experimental import pallas as pl
from jax.experimental.pallas import tpu as pltpu

LN_EPS = 1e-5


def _round_up(x, m):
    return (x + m - 1) // m * m


def _sublane_multiple(dtype):
    # Rows per fully packed sublane group: f32 -> 8, bf16 -> 16, int8/fp8 -> 32.
    return max(8, 32 // jnp.dtype(dtype).itemsize)


def _tpu_defaults():
    """Generation-aware (default row tile, VMEM cap in bytes)."""
    try:
        kind = jax.devices()[0].device_kind.lower()
    except Exception:
        kind = ""
    if "v5" in kind or "v6" in kind:
        # 128 MiB physical VMEM: bigger row tiles cut weight re-streaming.
        return 512, 100 * 1024 * 1024
    # v7x (64 MiB / TC) and unknown generations: conservative.
    return 256, 50 * 1024 * 1024


def _prenorm_linear_kernel(x_ref, gamma_ref, beta_ref, w_ref, b_ref, o_ref, y_ref):
    # Grid = (row tiles i, hidden tiles j); j is innermost and "arbitrary".
    # x_ref:     (TM, D)   token tile (same block for all j -> no re-DMA)
    # gamma_ref: (1, D)    LayerNorm weight (resident)
    # beta_ref:  (1, D)    LayerNorm bias   (resident)
    # w_ref:     (D, TN)   Linear weight tile (streamed over j)
    # b_ref:     (1, TN)   Linear bias tile
    # o_ref:     (TM, TN)  output tile
    # y_ref:     (TM, D)   VMEM scratch holding LayerNorm output (w dtype)

    @pl.when(pl.program_id(1) == 0)
    def _():
        # LayerNorm once per row tile, f32 stats, centered variance
        # (matches torch.nn.LayerNorm; no cancellation).
        xf = x_ref[...].astype(jnp.float32)
        inv_d = jnp.float32(1.0 / xf.shape[-1])
        mean = jnp.sum(xf, axis=-1, keepdims=True) * inv_d
        diff = xf - mean
        var = jnp.sum(diff * diff, axis=-1, keepdims=True) * inv_d
        rstd = jax.lax.rsqrt(var + LN_EPS)
        gamma = gamma_ref[...].astype(jnp.float32)
        beta = beta_ref[...].astype(jnp.float32)
        y = diff * rstd * gamma + beta
        y_ref[...] = y.astype(y_ref.dtype)

    # fn = Linear(dim -> hidden) on the MXU: operands in the weight's native
    # dtype (bf16 stays bf16), f32 accumulation.
    out = jnp.dot(y_ref[...], w_ref[...], preferred_element_type=jnp.float32)
    out = out + b_ref[...].astype(jnp.float32)
    o_ref[...] = out.astype(o_ref.dtype)


def prepare_prenorm_linear_params(gamma, beta, w, b, *, tn=256):
    """Pad Linear weight/bias ONCE at parameter init (not per call)."""
    D, H = w.shape
    if H <= tn:
        tn_eff = _round_up(H, 128)          # lane-dense output stores
        h_pad = tn_eff
    else:
        tn_eff = _round_up(tn, 128)
        h_pad = _round_up(H, tn_eff)

    w2 = w
    b2 = b.reshape(1, H)
    if h_pad != H:
        w2 = jnp.pad(w2, ((0, 0), (0, h_pad - H)))
        b2 = jnp.pad(b2, ((0, 0), (0, h_pad - H)))

    return dict(
        gamma=gamma.reshape(1, D),
        beta=beta.reshape(1, D),
        w=w2,
        b=b2,
        H=H,
        tn_eff=tn_eff,
    )


@functools.partial(jax.jit, static_argnames=("tm_eff", "tn_eff", "vmem_limit"))
def _prenorm_linear_call(x2, gamma2, beta2, w2, b2, *, tm_eff, tn_eff, vmem_limit):
    m_pad, D = x2.shape
    _, h_pad = w2.shape
    grid = (m_pad // tm_eff, h_pad // tn_eff)

    grid_spec = pltpu.PrefetchScalarGridSpec(
        num_scalar_prefetch=0,
        grid=grid,
        in_specs=[
            pl.BlockSpec((tm_eff, D), lambda i, j: (i, 0)),   # x tile
            pl.BlockSpec((1, D), lambda i, j: (0, 0)),        # gamma (resident)
            pl.BlockSpec((1, D), lambda i, j: (0, 0)),        # beta  (resident)
            pl.BlockSpec((D, tn_eff), lambda i, j: (0, j)),   # W tile (streamed)
            pl.BlockSpec((1, tn_eff), lambda i, j: (0, j)),   # bias tile
        ],
        out_specs=pl.BlockSpec((tm_eff, tn_eff), lambda i, j: (i, j)),
        scratch_shapes=[pltpu.VMEM((tm_eff, D), w2.dtype)],   # LayerNorm output
    )

    return pl.pallas_call(
        _prenorm_linear_kernel,
        out_shape=jax.ShapeDtypeStruct((m_pad, h_pad), x2.dtype),
        grid_spec=grid_spec,
        compiler_params=pltpu.CompilerParams(
            # Row tiles shard across TensorCores (v7x megacore); the hidden
            # axis must stay sequential so the pl.when(j==0) scratch init holds.
            dimension_semantics=("parallel", "arbitrary"),
            vmem_limit_bytes=vmem_limit,
        ),
    )(x2, gamma2, beta2, w2, b2)


def prenorm_linear(x, params, *, tm=None):
    """x: (B, S, D) -> (B, S, H) = Linear(LayerNorm(x)).

    `params` must come from prepare_prenorm_linear_params (padded once)."""
    B, S, D = x.shape
    H = params["H"]
    tn_eff = params["tn_eff"]
    n_tokens = B * S

    default_tm, vmem_cap = _tpu_defaults()
    if tm is None:
        tm = default_tm

    # Row tile: biggest sublane-packed tile that fits the token count / budget.
    sub = _sublane_multiple(x.dtype)
    tm_eff = _round_up(min(tm, _round_up(n_tokens, sub)), sub)

    xb = jnp.dtype(x.dtype).itemsize
    wb = jnp.dtype(params["w"].dtype).itemsize

    def _vmem_est(tm_e):
        # Double-buffered pipelined tiles + single-buffered y scratch.
        return (2 * tm_e * D * xb                 # x tiles
                + 2 * D * tn_eff * wb             # W tiles
                + 2 * tm_e * tn_eff * xb          # output tiles
                + 2 * (2 * D * 4 + tn_eff * 4)    # gamma/beta/bias (small)
                + tm_e * D * wb)                  # LayerNorm scratch

    while tm_eff > sub and _vmem_est(tm_eff) > vmem_cap:
        tm_eff = max(sub, _round_up(tm_eff // 2, sub))

    vmem_limit = int(min(vmem_cap,
                         max(32 * 1024 * 1024, int(1.25 * _vmem_est(tm_eff)))))

    m_pad = _round_up(n_tokens, tm_eff)
    x2 = x.reshape(n_tokens, D)
    if m_pad != n_tokens:
        x2 = jnp.pad(x2, ((0, m_pad - n_tokens), (0, 0)))

    out2 = _prenorm_linear_call(
        x2, params["gamma"], params["beta"], params["w"], params["b"],
        tm_eff=tm_eff, tn_eff=tn_eff, vmem_limit=vmem_limit)

    return out2[:n_tokens, :H].reshape(B, S, H)


def _reference(x, gamma, beta, w, b):
    xf = x.astype(jnp.float32)
    mean = jnp.mean(xf, axis=-1, keepdims=True)
    var = jnp.mean((xf - mean) ** 2, axis=-1, keepdims=True)
    xn = (xf - mean) / jnp.sqrt(var + LN_EPS)
    y = xn * gamma.astype(jnp.float32) + beta.astype(jnp.float32)
    return (y @ w.astype(jnp.float32) + b.astype(jnp.float32)).astype(x.dtype)


if __name__ == "__main__":
    B, S, D, H = 2, 8, 32, 32

    key = jax.random.PRNGKey(0)
    kx, kw, kb = jax.random.split(key, 3)

    x = jax.random.normal(kx, (B, S, D), dtype=jnp.float32)

    # nn.LayerNorm(dim): weight=1, bias=0 (PyTorch defaults)
    gamma = jnp.ones((D,), dtype=jnp.float32)
    beta = jnp.zeros((D,), dtype=jnp.float32)
    # fn = nn.Linear(D, H): weight stored pre-transposed as (D, H)
    w = jax.random.normal(kw, (D, H), dtype=jnp.float32) * (1.0 / jnp.sqrt(D))
    b = jax.random.normal(kb, (H,), dtype=jnp.float32) * 0.01

    params = prepare_prenorm_linear_params(gamma, beta, w, b)

    out = prenorm_linear(x, params)
    out = jax.block_until_ready(out)

    ref = _reference(x, gamma, beta, w, b)
    assert out.shape == (B, S, H)
    assert jnp.max(jnp.abs(out - ref)) < 1e-4, "mismatch vs. reference"

    print("KERNEL_OK")
</pallas_src>

<mosaic_0001>
module attributes {stable_mosaic.version = 11 : i64} {
  func.func @_prenorm_linear_kernel(%arg0: i32, %arg1: i32, %arg2: memref<16x32xf32, #tpu.memory_space<vmem>>, %arg3: memref<1x32xf32, #tpu.memory_space<vmem>>, %arg4: memref<1x32xf32, #tpu.memory_space<vmem>>, %arg5: memref<32x128xf32, #tpu.memory_space<vmem>>, %arg6: memref<1x128xf32, #tpu.memory_space<vmem>>, %arg7: memref<16x128xf32, #tpu.memory_space<vmem>>, %arg8: memref<16x32xf32, #tpu.memory_space<vmem>>) attributes {dimension_semantics = [#tpu.dimension_semantics<parallel>, #tpu.dimension_semantics<arbitrary>], iteration_bounds = array<i64: 1, 1>, scalar_prefetch = 0 : i64, scratch_operands = 1 : i64, tpu.core_type = #tpu.core_type<tc>, window_params = [{transform_indices = @transform_0, window_bounds = array<i64: 16, 32>}, {pipeline_mode = #tpu.pipeline_mode<synchronous>, transform_indices = @transform_1, window_bounds = array<i64: 1, 32>}, {pipeline_mode = #tpu.pipeline_mode<synchronous>, transform_indices = @transform_2, window_bounds = array<i64: 1, 32>}, {transform_indices = @transform_3, window_bounds = array<i64: 32, 128>}, {transform_indices = @transform_4, window_bounds = array<i64: 1, 128>}, {transform_indices = @transform_5, window_bounds = array<i64: 16, 128>}]} {
    %c0_i32 = arith.constant 0 : i32
    %0 = arith.cmpi eq, %arg1, %c0_i32 : i32
    %1 = arith.extui %0 : i1 to i32
    %c0_i32_0 = arith.constant 0 : i32
    %2 = arith.cmpi ne, %1, %c0_i32_0 : i32
    scf.if %2 {
      %c0_8 = arith.constant 0 : index
      %c0_9 = arith.constant 0 : index
      %10 = vector.load %arg2[%c0_8, %c0_9] : memref<16x32xf32, #tpu.memory_space<vmem>>, vector<16x32xf32>
      %cst_10 = arith.constant dense<0.000000e+00> : vector<16xf32>
      %11 = vector.multi_reduction <add>, %10, %cst_10 [1] : vector<16x32xf32> to vector<16xf32>
      %12 = vector.shape_cast %11 : vector<16xf32> to vector<16x1xf32>
      %cst_11 = arith.constant 3.125000e-02 : f32
      %13 = vector.broadcast %cst_11 : f32 to vector<16x1xf32>
      %14 = arith.mulf %12, %13 : vector<16x1xf32>
      %15 = vector.broadcast %14 : vector<16x1xf32> to vector<16x32xf32>
      %16 = arith.subf %10, %15 : vector<16x32xf32>
      %17 = arith.mulf %16, %16 : vector<16x32xf32>
      %cst_12 = arith.constant dense<0.000000e+00> : vector<16xf32>
      %18 = vector.multi_reduction <add>, %17, %cst_12 [1] : vector<16x32xf32> to vector<16xf32>
      %19 = vector.shape_cast %18 : vector<16xf32> to vector<16x1xf32>
      %cst_13 = arith.constant 3.125000e-02 : f32
      %20 = vector.broadcast %cst_13 : f32 to vector<16x1xf32>
      %21 = arith.mulf %19, %20 : vector<16x1xf32>
      %cst_14 = arith.constant 9.99999974E-6 : f32
      %22 = vector.broadcast %cst_14 : f32 to vector<16x1xf32>
      %23 = arith.addf %21, %22 : vector<16x1xf32>
      %24 = math.rsqrt %23 : vector<16x1xf32>
      %c0_15 = arith.constant 0 : index
      %c0_16 = arith.constant 0 : index
      %25 = vector.load %arg3[%c0_15, %c0_16] : memref<1x32xf32, #tpu.memory_space<vmem>>, vector<1x32xf32>
      %c0_17 = arith.constant 0 : index
      %c0_18 = arith.constant 0 : index
      %26 = vector.load %arg4[%c0_17, %c0_18] : memref<1x32xf32, #tpu.memory_space<vmem>>, vector<1x32xf32>
      %27 = vector.broadcast %24 : vector<16x1xf32> to vector<16x32xf32>
      %28 = arith.mulf %16, %27 : vector<16x32xf32>
      %29 = vector.broadcast %25 : vector<1x32xf32> to vector<16x32xf32>
      %30 = arith.mulf %28, %29 : vector<16x32xf32>
      %31 = vector.broadcast %26 : vector<1x32xf32> to vector<16x32xf32>
      %32 = arith.addf %30, %31 : vector<16x32xf32>
      %c0_19 = arith.constant 0 : index
      %c0_20 = arith.constant 0 : index
      %33 = vector.load %arg8[%c0_19, %c0_20] : memref<16x32xf32, #tpu.memory_space<vmem>>, vector<16x32xf32>
      tpu.vector_store %arg8[%c0_19, %c0_20], %32 {strides = array<i32>} : memref<16x32xf32, #tpu.memory_space<vmem>>, vector<16x32xf32>,
    } else {
    }
    %c0 = arith.constant 0 : index
    %c0_1 = arith.constant 0 : index
    %3 = vector.load %arg8[%c0, %c0_1] : memref<16x32xf32, #tpu.memory_space<vmem>>, vector<16x32xf32>
    %c0_2 = arith.constant 0 : index
    %c0_3 = arith.constant 0 : index
    %4 = vector.load %arg5[%c0_2, %c0_3] : memref<32x128xf32, #tpu.memory_space<vmem>>, vector<32x128xf32>
    %cst = arith.constant dense<0.000000e+00> : vector<16x128xf32>
    %5 = tpu.matmul %3, %4, %cst {dimension_numbers = #tpu.dot_dimension_numbers<[1], [0], [0], [1], [0, 0, 1, 1], [], []>} : vector<16x32xf32>, vector<32x128xf32>, vector<16x128xf32> -> vector<16x128xf32>
    %c0_4 = arith.constant 0 : index
    %c0_5 = arith.constant 0 : index
    %6 = vector.load %arg6[%c0_4, %c0_5] : memref<1x128xf32, #tpu.memory_space<vmem>>, vector<1x128xf32>
    %7 = vector.broadcast %6 : vector<1x128xf32> to vector<16x128xf32>
    %8 = arith.addf %5, %7 : vector<16x128xf32>
    %c0_6 = arith.constant 0 : index
    %c0_7 = arith.constant 0 : index
    %9 = vector.load %arg7[%c0_6, %c0_7] : memref<16x128xf32, #tpu.memory_space<vmem>>, vector<16x128xf32>
    tpu.vector_store %arg7[%c0_6, %c0_7], %8 {strides = array<i32>} : memref<16x128xf32, #tpu.memory_space<vmem>>, vector<16x128xf32>,
    return
  }
  func.func @transform_0(%arg0: i32, %arg1: i32) -> (i32, i32) {
    %c0_i32 = arith.constant 0 : i32
    %c0_i32_0 = arith.constant 0 : i32
    return %arg0, %c0_i32 : i32, i32
  }
  func.func @transform_1(%arg0: i32, %arg1: i32) -> (i32, i32) {
    %c0_i32 = arith.constant 0 : i32
    %c0_i32_0 = arith.constant 0 : i32
    %c0_i32_1 = arith.constant 0 : i32
    return %c0_i32, %c0_i32_0 : i32, i32
  }
  func.func @transform_2(%arg0: i32, %arg1: i32) -> (i32, i32) {
    %c0_i32 = arith.constant 0 : i32
    %c0_i32_0 = arith.constant 0 : i32
    %c0_i32_1 = arith.constant 0 : i32
    return %c0_i32, %c0_i32_0 : i32, i32
  }
  func.func @transform_3(%arg0: i32, %arg1: i32) -> (i32, i32) {
    %c0_i32 = arith.constant 0 : i32
    %c0_i32_0 = arith.constant 0 : i32
    return %c0_i32, %arg1 : i32, i32
  }
  func.func @transform_4(%arg0: i32, %arg1: i32) -> (i32, i32) {
    %c0_i32 = arith.constant 0 : i32
    %c0_i32_0 = arith.constant 0 : i32
    return %c0_i32, %arg1 : i32, i32
  }
  func.func @transform_5(%arg0: i32, %arg1: i32) -> (i32, i32) {
    %c0_i32 = arith.constant 0 : i32
    return %arg0, %arg1 : i32, i32
  }
}

</mosaic_0001>

<llo_original>
// kernel: _prenorm_linear_call.1
$region0: #{_prenorm_linear_call.1}
  #allocation0 [shape = 'u32[]', space=smem, size = 0x4, offset = 0x4, fixed_abs, tag = 'smem constant byte address 0x4 - core index']
  #allocation1 [shape = 'u32[144,128]{1,0:T(1,128)}', space=vmem, size = 0x12000, scoped, tag = 'internal scratch']
  #allocation2 [shape = 'f32[16,32]{1,0:T(8,128)}', space=vmem, size = 0x2000, scoped, tag = 'scratch operand']
  %s0 = inlined_call_operand.hbm [shape: f32[16,32], index: 0, kind: input, shape index: {}]
  %s1 = inlined_call_operand.vmem [shape: f32[1,32], index: 1, kind: input, shape index: {}]
  %s2 = inlined_call_operand.vmem [shape: f32[1,32], index: 2, kind: input, shape index: {}]
  %s3 = inlined_call_operand.hbm [shape: f32[32,128], index: 3, kind: input, shape index: {}]
  %s4 = inlined_call_operand.vmem [shape: f32[1,128], index: 4, kind: input, shape index: {}]
  %s5 = inlined_call_operand.hbm [shape: f32[16,128], index: 5, kind: output, shape index: {}]
  %s6 = sld [smem:[#allocation0]]
  $region42: #{_prenorm_linear_call.1} parent=0
    _
  %s8 = ssub.s32 1, %s6
  %s9 = scalar_select 0, %s8, %s6
  $region1: #{_prenorm_linear_call.1} parent=0
    #allocation3 [shape = 'u8[8192]{0}', space=vmem, size = 0x2000, scoped, tag = 'input window, operand 0, single buffered']
    #allocation4 [shape = 's32[1]{0}', space=sflag, size = 0x4, scoped, tag = 'scoped memory for _prenorm_linear_call.1']
    #allocation5 [shape = 's32[1]{0}', space=sflag, size = 0x4, scoped, tag = 'scoped memory for _prenorm_linear_call.1']
    #allocation6 [shape = 'u8[16384]{0}', space=vmem, size = 0x4000, scoped, tag = 'input window, operand 3, single buffered']
    #allocation7 [shape = 's32[1]{0}', space=sflag, size = 0x4, scoped, tag = 'scoped memory for _prenorm_linear_call.1']
    #allocation8 [shape = 'u8[8192]{0}', space=vmem, size = 0x2000, scoped, tag = 'output window, operand 0, single buffered']
    %10 = vsyncpa [#allocation4], 0
    %11 = vsyncpa [#allocation7], 0
    %12 = vsyncpa [#allocation5], 0
    // Predicated region
    $region2: #{_prenorm_linear_call.1} parent=1 // pred_check
      _
    $region3: #{_prenorm_linear_call.1} parent=1 // pred_check_branch
      %14 = sbr.rel (0) target = $region5
    $region4: #{_prenorm_linear_call.1} parent=1 // pred_region
      %s16 = ssub.s32 256, 256
      %17 = vsyncadd [#allocation4], %s16
      %s18 = sshll.u32 [#allocation3], 4
      %s19 = int_to_ptr.vmem [resolvable:$true] %s18
      %24 = dma.hbm_to_vmem [thread:$0]  %s0, 256, %s19, [#allocation4], 128, 128, 8
    $region5: #{_prenorm_linear_call.1} parent=1 // pred_fallthru
      _
    // Predicated region
    $region6: #{_prenorm_linear_call.1} parent=1 // pred_check
      _
    $region7: #{_prenorm_linear_call.1} parent=1 // pred_check_branch
      %26 = sbr.rel (0) target = $region9
    $region8: #{_prenorm_linear_call.1} parent=1 // pred_region
      _
    $region9: #{_prenorm_linear_call.1} parent=1 // pred_fallthru
      _
    // Predicated region
    $region10: #{_prenorm_linear_call.1} parent=1 // pred_check
      _
    $region11: #{_prenorm_linear_call.1} parent=1 // pred_check_branch
      %28 = sbr.rel (0) target = $region13
    $region12: #{_prenorm_linear_call.1} parent=1 // pred_region
      _
    $region13: #{_prenorm_linear_call.1} parent=1 // pred_fallthru
      _
    // Predicated region
    $region14: #{_prenorm_linear_call.1} parent=1 // pred_check
      _
    $region15: #{_prenorm_linear_call.1} parent=1 // pred_check_branch
      %30 = sbr.rel (0) target = $region17
    $region16: #{_prenorm_linear_call.1} parent=1 // pred_region
      %s32 = ssub.s32 512, 512
      %33 = vsyncadd [#allocation7], %s32
      %s34 = sshll.u32 [#allocation6], 4
      %s35 = int_to_ptr.vmem [resolvable:$true] %s34
      %40 = dma.hbm_to_vmem [thread:$0]  %s3, 512, %s35, [#allocation7], 128, 128, 8
    $region17: #{_prenorm_linear_call.1} parent=1 // pred_fallthru
      _
    // Predicated region
    $region18: #{_prenorm_linear_call.1} parent=1 // pred_check
      _
    $region19: #{_prenorm_linear_call.1} parent=1 // pred_check_branch
      %42 = sbr.rel (0) target = $region21
    $region20: #{_prenorm_linear_call.1} parent=1 // pred_region
      _
    $region21: #{_prenorm_linear_call.1} parent=1 // pred_fallthru
      _
    // Predicated region
    $region22: #{_prenorm_linear_call.1} parent=1 // pred_check
      _
    $region23: #{_prenorm_linear_call.1} parent=1 // pred_check_branch
      %44 = sbr.rel (0) target = $region25
    $region24: #{_prenorm_linear_call.1} parent=1 // pred_region
      %45 = dma.done [#allocation4], 256
    $region25: #{_prenorm_linear_call.1} parent=1 // pred_fallthru
      _
    // Predicated region
    $region26: #{_prenorm_linear_call.1} parent=1 // pred_check
      _
    $region27: #{_prenorm_linear_call.1} parent=1 // pred_check_branch
      %47 = sbr.rel (0) target = $region29
    $region28: #{_prenorm_linear_call.1} parent=1 // pred_region
      %48 = dma.done [#allocation7], 512
    $region29: #{_prenorm_linear_call.1} parent=1 // pred_fallthru
      _
    %p49 = scmp.eq.s32.totalorder 0, 0
    // Predicated region
    $region30: #{_prenorm_linear_call.1} parent=1 // pred_check
      %p50 = pneg %p49
    $region31: #{_prenorm_linear_call.1} parent=1 // pred_check_branch
      %52 = sbr.rel (%p50) target = $region33
    $region32: #{_prenorm_linear_call.1} parent=1 // pred_region
      %v53 = vld [vmem:[#allocation3] sm:$0xff]
      %v54 = vld [vmem:[#allocation3 + $0x8] sm:$0xff]
      %vm55 = vcmask 261120
      %v56 = vsel %vm55, %v53, 0.0
      %57 = vadd.xlane.f32.xlu0 %v56
      %v58 = vpop.xlane.xlu0 %57
      %v59 = vsel %vm55, %v54, 0.0
      %60 = vadd.xlane.f32.xlu0 %v59
      %v61 = vpop.xlane.xlu0 %60
      %v62 = vmul.f32 %v58, 0.03125
      %v63 = vmul.f32 %v61, 0.03125
      %v64 = vsub.f32 %v53, %v62
      %v65 = vsub.f32 %v54, %v63
      %v66 = vmul.f32 %v64, %v64
      %v67 = vmul.f32 %v65, %v65
      %v68 = vsel %vm55, %v66, 0.0
      %69 = vadd.xlane.f32.xlu0 %v68
      %v70 = vpop.xlane.xlu0 %69
      %v71 = vsel %vm55, %v67, 0.0
      %72 = vadd.xlane.f32.xlu0 %v71
      %v73 = vpop.xlane.xlu0 %72
      %v74 = vmul.f32 %v70, 0.03125
      %v75 = vmul.f32 %v73, 0.03125
      %v76 = vadd.f32 %v74, 1e-05
      %v77 = vadd.f32 %v75, 1e-05
      %v78 = vrsqrt.pop %v76
      %v79 = vrsqrt.pop %v77
      %v80 = vld [vmem:[%s1] sm:$0x1]
      %v81 = vld [vmem:[%s2] sm:$0x1]
      %v82 = vmul.f32 %v64, %v78
      %v83 = vmul.f32 %v65, %v79
      %v85 = vlaneseq
      %v86 = vshrl.u32 %v85, 7
      %v87 = vsub.s32 0, %v86
      %v88 = vrot.slane %v80, %v87
      %v90 = vmul.f32 %v82, %v88
      %v91 = vmul.f32 %v83, %v88
      %v93 = vlaneseq
      %v94 = vshrl.u32 %v93, 7
      %v95 = vsub.s32 0, %v94
      %v96 = vrot.slane %v81, %v95
      %v98 = vadd.f32 %v90, %v96
      %v99 = vadd.f32 %v91, %v96
      %100 = vst.msk [vmem:[#allocation2] sm:$0xff] %vm55, %v98
      %101 = vst.msk [vmem:[#allocation2 + $0x8] sm:$0xff] %vm55, %v99
    $region33: #{_prenorm_linear_call.1} parent=1 // pred_fallthru
      _
    %v102 = vld [vmem:[#allocation2] sm:$0xff]
    %v103 = vld [vmem:[#allocation2 + $0x8] sm:$0xff]
    %v104 = vld [vmem:[#allocation6] sm:$0xff]
    %v105 = vld [vmem:[#allocation6 + $0x8] sm:$0xff]
    %v106 = vld [vmem:[#allocation6 + $0x10] sm:$0xff]
    %v107 = vld [vmem:[#allocation6 + $0x18] sm:$0xff]
    %v108 = vld [vmem:[%s4] sm:$0x1]
    %v110 = vlaneseq
    %v111 = vshrl.u32 %v110, 7
    %v112 = vsub.s32 0, %v111
    %v113 = vrot.slane %v108, %v112
    %vm115 = vcmask 261120
    %v117 = vsel %vm115, %v102, 0
    %v120 = vsel %vm115, %v103, 0
    %122 = vmatprep.subr.mxu0 0.0
    %123 = vmatpush1.msra.mxu0 0.0
    %124 = vmatprep.subr.mxu0 0.0
    %125 = vmatpush1.msra.mxu0 0.0
    %126 = vmatprep.subr.mxu0 0.0
    %127 = vmatpush1.msra.mxu0 0.0
    %128 = vmatprep.subr.mxu0 0.0
    %129 = vmatpush1.msra.mxu0 0.0
    %130 = vmatprep.subr.mxu0 0.0
    %131 = vmatpush1.msra.mxu0 0.0
    %132 = vmatprep.subr.mxu0 0.0
    %133 = vmatpush1.msra.mxu0 0.0
    %134 = vmatprep.subr.mxu0 0.0
    %135 = vmatpush1.msra.mxu0 0.0
    %136 = vmatprep.subr.mxu0 0.0
    %137 = vmatpush1.msra.mxu0 0.0
    %138 = vmatprep.subr.mxu0 0.0
    %139 = vmatpush1.msra.mxu0 0.0
    %140 = vmatprep.subr.mxu0 0.0
    %141 = vmatpush1.msra.mxu0 0.0
    %142 = vmatprep.subr.mxu0 0.0
    %143 = vmatpush1.msra.mxu0 0.0
    %144 = vmatprep.subr.mxu0 0.0
    %145 = vmatpush1.msra.mxu0 0.0
    %146 = vmatprep.subr.mxu0 0.0
    %147 = vmatpush1.msra.mxu0 %v107
    %148 = vmatprep.subr.mxu0 0.0
    %149 = vmatpush1.msra.mxu0 %v106
    %150 = vmatprep.subr.mxu0 0.0
    %151 = vmatpush1.msra.mxu0 %v105
    %152 = vmatprep.subr.mxu0 0.0
    %153 = vmatpush1.msra.mxu0 %v104
    %154 = vmatprep.subr.mxu0 0.0
    %155 = vmatpush2.msra.mxu0 0.0
    %156 = vmatprep.subr.mxu0 0.0
    %157 = vmatpush2.msra.mxu0 0.0
    %158 = vmatprep.subr.mxu0 0.0
    %159 = vmatpush2.msra.mxu0 0.0
    %160 = vmatprep.subr.mxu0 0.0
    %161 = vmatpush2.msra.mxu0 0.0
    %162 = vmatprep.subr.mxu0 0.0
    %163 = vmatpush2.msra.mxu0 0.0
    %164 = vmatprep.subr.mxu0 0.0
    %165 = vmatpush2.msra.mxu0 0.0
    %166 = vmatprep.subr.mxu0 0.0
    %167 = vmatpush2.msra.mxu0 0.0
    %168 = vmatprep.subr.mxu0 0.0
    %169 = vmatpush2.msra.mxu0 0.0
    %170 = vmatprep.subr.mxu0 0.0
    %171 = vmatpush2.msra.mxu0 0.0
    %172 = vmatprep.subr.mxu0 0.0
    %173 = vmatpush2.msra.mxu0 0.0
    %174 = vmatprep.subr.mxu0 0.0
    %175 = vmatpush2.msra.mxu0 0.0
    %176 = vmatprep.subr.mxu0 0.0
    %177 = vmatpush2.msra.mxu0 0.0
    %178 = vmatprep.subr.mxu0 0.0
    %179 = vmatpush2.msra.mxu0 0.0
    %180 = vmatprep.subr.mxu0 0.0
    %181 = vmatpush2.msra.mxu0 0.0
    %182 = vmatprep.subr.mxu0 0.0
    %183 = vmatpush2.msra.mxu0 0.0
    %184 = vmatprep.subr.mxu0 0.0
    %185 = vmatpush2.msra.mxu0 0.0
    %186 = vmatprep.mubr.f32.mxu0 0.0
    %187 = vmatmul.mubr.f32.gmra.mxu0 %v117
    %v188 = vpop.f32.mrf.mxu0
    %v189 = vadd.f32 %v113, %v188
    %v190 = vpop.f32.mrf.mxu0
    %191 = vmatprep.mubr.f32.mxu0 0.0
    %192 = vmatmul.mubr.f32.gmra.mxu0 %v120
    %v193 = vpop.f32.mrf.mxu0
    %v194 = vadd.f32 %v113, %v193
    %v195 = vpop.f32.mrf.mxu0
    %196 = vdwg.mxu0
    %197 = vst [vmem:[#allocation8] sm:$0xff] %v189
    %198 = vst [vmem:[#allocation8 + $0x8] sm:$0xff] %v194
    // Predicated region
    $region34: #{_prenorm_linear_call.1} parent=1 // pred_check
      _
    $region35: #{_prenorm_linear_call.1} parent=1 // pred_check_branch
      %200 = sbr.rel (0) target = $region37
    $region36: #{_prenorm_linear_call.1} parent=1 // pred_region
      %s202 = ssub.s32 256, 256
      %203 = vsyncadd [#allocation5], %s202
      %s204 = sshll.u32 [#allocation8], 4
      %s205 = int_to_ptr.vmem [resolvable:$true] %s204
      %210 = dma.vmem_to_hbm [thread:$0]  %s205, 256, %s5, [#allocation5], 128, 128, 8
    $region37: #{_prenorm_linear_call.1} parent=1 // pred_fallthru
      _
    // Predicated region
    $region38: #{_prenorm_linear_call.1} parent=1 // pred_check
      _
    $region39: #{_prenorm_linear_call.1} parent=1 // pred_check_branch
      %212 = sbr.rel (0) target = $region41
    $region40: #{_prenorm_linear_call.1} parent=1 // pred_region
      %213 = dma.done [#allocation5], 256
    $region41: #{_prenorm_linear_call.1} parent=1 // pred_fallthru
      _
    %214 = vsyncpa [#allocation4], 1
    %215 = vsyncpa [#allocation7], 1
    %216 = vsyncpa [#allocation5], 1

</llo_original>
